<compile_context>
chip_gen: v7x
topology: tpu7x:2x2x1
jax: 0.10.0
libtpu: 0.0.40
codegen_flags: <defaults>
</compile_context>

<pallas_src>
import functools

import jax
import jax.numpy as jnp
import numpy as np
from jax.experimental import pallas as pl
from jax.experimental.pallas import tpu as pltpu

_PAD_DIST = 1e9     # sentinel ||U_j||^2 for padded columns  (>> m  -> hinge = 0)
_PAD_LABEL = -1.0   # sentinel label for padded / never-written rows (-> sim = 1)


def _dsh_kernel(u_ref, usq_ref, blab_ref, Ut_ref, Usq_ref, tlab_ref,
                out_ref, acc_ref, *, m):
    t = pl.program_id(1)           # tile within this core's slice (reduction)

    @pl.when(t == 0)
    def _():
        acc_ref[...] = jnp.zeros_like(acc_ref)

    u = u_ref[...]                 # [B, bit]      bf16 (resident)
    u_sq = usq_ref[...]            # [B, 1]        f32  ||u_i||^2 (precomputed)
    blab = blab_ref[...]           # [B, 1]        f32  batch labels
    Ut = Ut_ref[...]               # [bit, tile_n] bf16 lane-dense stream
    U_sq = Usq_ref[...]            # [1, tile_n]   f32  ||U_j||^2 (pad = 1e9)
    tlab = tlab_ref[...]           # [1, tile_n]   f32  train labels (pad = -1)

    # ||u_i - U_j||^2 = ||u_i||^2 + ||U_j||^2 - 2 u_i.U_j   (MXU, f32 acc)
    inner = jnp.dot(u, Ut, preferred_element_type=jnp.float32)   # [B, tile_n]
    dist = jnp.maximum(u_sq + U_sq - 2.0 * inner, 0.0)

    # sim = 1 iff labels differ  ==  original (y @ Y.T == 0) for one-hot y.
    # Padded columns: label -1 -> sim = 1, dist >= 1e9 -> exactly zero loss,
    # so no explicit padding mask is needed.
    sim = (blab != tlab).astype(jnp.float32)

    loss_tile = (1.0 - sim) * 0.5 * dist + sim * 0.5 * jnp.maximum(m - dist, 0.0)

    # Vector accumulator: the hot loop is pure VPU adds; the single full
    # reduction happens only under the last-step pl.when.
    acc_ref[...] += loss_tile

    @pl.when(t == pl.num_programs(1) - 1)
    def _():
        out_ref[...] = jnp.sum(acc_ref[...]).reshape(1, 1, 1)


def _default_num_parallel():
    # Split the streamed columns over both TensorCores only on 2-TC chips
    # (v7x); on single-TC chips the extra axis only restarts the pipeline.
    try:
        kind = jax.devices()[0].device_kind.lower()
    except Exception:
        return 1
    return 2 if "7" in kind else 1


def _geometry(num_train, tile_n, num_parallel):
    tile_n = max(128, min((tile_n // 128) * 128, pl.cdiv(num_train, 128) * 128))
    num_tiles = pl.cdiv(num_train, tile_n)
    P = max(1, min(num_parallel, num_tiles))
    num_tiles = pl.cdiv(num_tiles, P) * P
    return tile_n, P, num_tiles // P, num_tiles * tile_n


class DSHLoss:
    """JAX/Pallas port of the PyTorch DSHLoss module (single-label y).

    Persistent state (kernel-friendly layout, updated in place via donation):
      Ut   [bit, n_pad]  bf16  transposed, zero-padded hash-code table
      U_sq [1,  n_pad]   f32   precomputed row norms (pad cols = 1e9)
      tlab [1,  n_pad]   f32   class index per row (unwritten / pad = -1)
    """

    def __init__(self, num_train, n_class, bit, alpha, *,
                 tile_n=16384, num_parallel=None):
        if num_parallel is None:
            num_parallel = _default_num_parallel()
        self.bit = bit
        self.n_class = n_class
        self.alpha = float(alpha)
        self.m = 2.0 * bit
        self.num_train = num_train
        self.tile_n, self.P, self.tiles_per_core, self.n_pad = _geometry(
            num_train, tile_n, num_parallel)

        # torch.zeros() init: zero codes (norm 0) and "no label" sentinel,
        # which reproduces (y @ 0 == 0) -> sim = 1 of the reference.
        self.Ut = jnp.zeros((bit, self.n_pad), jnp.bfloat16)
        self.U_sq = jnp.full((1, self.n_pad), _PAD_DIST, jnp.float32
                             ).at[0, :num_train].set(0.0)
        self.tlab = jnp.full((1, self.n_pad), _PAD_LABEL, jnp.float32)

        self._step = jax.jit(self._build_step(), donate_argnums=(3, 4, 5))

    def load_state(self, U0, labels0):
        """Overwrite state from a dense f32 code table + int class labels."""
        U0 = jnp.asarray(U0, jnp.float32)
        pad = self.n_pad - self.num_train
        self.Ut = jnp.pad(U0.T.astype(jnp.bfloat16), ((0, 0), (0, pad)))
        self.U_sq = jnp.pad(jnp.sum(U0 * U0, axis=1)[None, :],
                            ((0, 0), (0, pad)), constant_values=_PAD_DIST)
        self.tlab = jnp.pad(jnp.asarray(labels0, jnp.float32)[None, :],
                            ((0, 0), (0, pad)), constant_values=_PAD_LABEL)

    def _build_step(self):
        bit = self.bit
        m, alpha, num_train = self.m, self.alpha, self.num_train
        tile_n, P, tiles_per_core = self.tile_n, self.P, self.tiles_per_core

        def vmem_limit(B):
            # double-buffered streamed cols (bf16 Ut + f32 U_sq + f32 labels)
            stream = 2 * tile_n * (2 * bit + 4 + 4)
            acc = 4 * B * tile_n * 4          # f32 accumulator + temporaries
            return int(min(max(2 * (stream + acc), 32 * 1024 * 1024),
                           100 * 1024 * 1024))

        col_map = lambda p_, t_: (0, p_ * tiles_per_core + t_)

        def step(u, y, ind, Ut, U_sq, tlab):
            u = u.astype(jnp.float32)
            B = u.shape[0]
            # TODO(synk): genuinely multi-hot labels would need the y @ Y.T
            # similarity path; this port assumes single-label (one-hot) y.
            blab = jnp.argmax(y, axis=1).astype(jnp.float32)
            u_sq = jnp.sum(u * u, axis=1)

            # In-place (donated) column scatter == self.U[ind]=u ; self.Y[ind]=y.
            Ut = Ut.at[:, ind].set(u.T.astype(jnp.bfloat16))
            U_sq = U_sq.at[0, ind].set(u_sq)
            tlab = tlab.at[0, ind].set(blab)

            kernel = functools.partial(_dsh_kernel, m=m)
            partials = pl.pallas_call(
                kernel,
                out_shape=jax.ShapeDtypeStruct((P, 1, 1), jnp.float32),
                grid_spec=pltpu.PrefetchScalarGridSpec(
                    num_scalar_prefetch=0,
                    grid=(P, tiles_per_core),
                    in_specs=[
                        pl.BlockSpec((B, bit), lambda p_, t_: (0, 0)),
                        pl.BlockSpec((B, 1), lambda p_, t_: (0, 0)),
                        pl.BlockSpec((B, 1), lambda p_, t_: (0, 0)),
                        pl.BlockSpec((bit, tile_n), col_map),
                        pl.BlockSpec((1, tile_n), col_map),
                        pl.BlockSpec((1, tile_n), col_map),
                    ],
                    out_specs=pl.BlockSpec((1, 1, 1), lambda p_, t_: (p_, 0, 0)),
                    scratch_shapes=[pltpu.VMEM((B, tile_n), jnp.float32)],
                ),
                compiler_params=pltpu.CompilerParams(
                    dimension_semantics=("parallel", "arbitrary"),
                    vmem_limit_bytes=vmem_limit(B)),
            )(u.astype(jnp.bfloat16), u_sq[:, None], blab[:, None],
              Ut, U_sq, tlab)

            loss1 = jnp.sum(partials) / jnp.float32(B * num_train)
            loss2 = alpha * jnp.mean(jnp.abs(1.0 - jnp.abs(u)))
            return loss1 + loss2, Ut, U_sq, tlab

        return step

    def __call__(self, u, y, ind):
        loss, self.Ut, self.U_sq, self.tlab = self._step(
            u, y, ind, self.Ut, self.U_sq, self.tlab)
        return loss


def dsh_loss_ref(u, y, ind, U, Y, *, bit, alpha):
    """Dense f32 reference matching the PyTorch module exactly."""
    m = 2.0 * bit
    u = u.astype(jnp.float32)
    y = y.astype(jnp.float32)
    U = U.at[ind].set(u)
    Y = Y.at[ind].set(y)
    dist = jnp.sum((u[:, None, :] - U[None, :, :]) ** 2, axis=2)
    ysim = (y @ Y.T == 0).astype(jnp.float32)
    loss = (1 - ysim) / 2 * dist + ysim / 2 * jnp.maximum(m - dist, 0.0)
    return loss.mean() + alpha * jnp.abs(1 - jnp.abs(u)).mean()


if __name__ == "__main__":
    bit = 32
    n_class = 16
    num_train = 300      # not a multiple of 128 -> exercises sentinel padding
    B = 8
    alpha = 0.1

    key = jax.random.PRNGKey(0)
    k1, k2, k3, k4, k5 = jax.random.split(key, 5)

    u = jax.random.normal(k1, (B, bit), dtype=jnp.float32)
    labels = jax.random.randint(k2, (B,), 0, n_class)
    y = jax.nn.one_hot(labels, n_class, dtype=jnp.float32)
    ind = jax.random.permutation(k3, num_train)[:B]

    # Deterministic non-zero state so both loss branches are exercised.
    U0 = jax.random.normal(k4, (num_train, bit), dtype=jnp.float32) * 0.5
    lab0 = jax.random.randint(k5, (num_train,), 0, n_class)
    Y0 = jax.nn.one_hot(lab0, n_class, dtype=jnp.float32)

    ref = dsh_loss_ref(u, y, ind, U0, Y0, bit=bit, alpha=alpha)

    # Default config (single large tile) and a small-tile config exercising
    # the multi-tile accumulator + padded-column path.
    crit = None
    for tile_n in (16384, 128):
        crit = DSHLoss(num_train, n_class, bit, alpha, tile_n=tile_n)
        crit.load_state(U0, lab0)
        loss = crit(u, y, ind)
        jax.block_until_ready(loss)
        np.testing.assert_allclose(np.asarray(loss), np.asarray(ref),
                                   rtol=1e-3, atol=1e-3)

    # State update check: scattered columns hold the (bf16) new codes.
    cols = np.asarray(crit.Ut)[:, np.asarray(ind)].astype(np.float32)
    np.testing.assert_allclose(cols, np.asarray(u).T, rtol=1e-2, atol=1e-2)

    print("KERNEL_OK")
</pallas_src>

<mosaic_0001>
module attributes {stable_mosaic.version = 11 : i64} {
  func.func @_dsh_kernel(%arg0: i32, %arg1: i32, %arg2: memref<8x32xbf16, #tpu.memory_space<vmem>>, %arg3: memref<8x1xf32, #tpu.memory_space<vmem>>, %arg4: memref<8x1xf32, #tpu.memory_space<vmem>>, %arg5: memref<32x384xbf16, #tpu.memory_space<vmem>>, %arg6: memref<1x384xf32, #tpu.memory_space<vmem>>, %arg7: memref<1x384xf32, #tpu.memory_space<vmem>>, %arg8: memref<1x1x1xf32, #tpu.memory_space<vmem>>, %arg9: memref<8x384xf32, #tpu.memory_space<vmem>>) attributes {dimension_semantics = [#tpu.dimension_semantics<parallel>, #tpu.dimension_semantics<arbitrary>], iteration_bounds = array<i64: 1, 1>, scalar_prefetch = 0 : i64, scratch_operands = 1 : i64, tpu.core_type = #tpu.core_type<tc>, window_params = [{pipeline_mode = #tpu.pipeline_mode<synchronous>, transform_indices = @transform_0, window_bounds = array<i64: 8, 32>}, {pipeline_mode = #tpu.pipeline_mode<synchronous>, transform_indices = @transform_1, window_bounds = array<i64: 8, 1>}, {pipeline_mode = #tpu.pipeline_mode<synchronous>, transform_indices = @transform_2, window_bounds = array<i64: 8, 1>}, {transform_indices = @transform_3, window_bounds = array<i64: 32, 384>}, {transform_indices = @transform_4, window_bounds = array<i64: 1, 384>}, {transform_indices = @transform_5, window_bounds = array<i64: 1, 384>}, {transform_indices = @transform_6, window_bounds = array<i64: 1, 1, 1>}]} {
    %c0_i32 = arith.constant 0 : i32
    %0 = arith.cmpi eq, %arg1, %c0_i32 : i32
    %1 = arith.extui %0 : i1 to i32
    %c0_i32_0 = arith.constant 0 : i32
    %2 = arith.cmpi ne, %1, %c0_i32_0 : i32
    scf.if %2 {
      %cst_25 = arith.constant 0.000000e+00 : f32
      %42 = vector.broadcast %cst_25 : f32 to vector<8x384xf32>
      %c0_26 = arith.constant 0 : index
      %c0_27 = arith.constant 0 : index
      %43 = vector.load %arg9[%c0_26, %c0_27] : memref<8x384xf32, #tpu.memory_space<vmem>>, vector<8x384xf32>
      tpu.vector_store %arg9[%c0_26, %c0_27], %42 {strides = array<i32>} : memref<8x384xf32, #tpu.memory_space<vmem>>, vector<8x384xf32>,
    } else {
    }
    %c0 = arith.constant 0 : index
    %c0_1 = arith.constant 0 : index
    %3 = vector.load %arg2[%c0, %c0_1] : memref<8x32xbf16, #tpu.memory_space<vmem>>, vector<8x32xbf16>
    %c0_2 = arith.constant 0 : index
    %c0_3 = arith.constant 0 : index
    %4 = vector.load %arg3[%c0_2, %c0_3] : memref<8x1xf32, #tpu.memory_space<vmem>>, vector<8x1xf32>
    %c0_4 = arith.constant 0 : index
    %c0_5 = arith.constant 0 : index
    %5 = vector.load %arg4[%c0_4, %c0_5] : memref<8x1xf32, #tpu.memory_space<vmem>>, vector<8x1xf32>
    %c0_6 = arith.constant 0 : index
    %c0_7 = arith.constant 0 : index
    %6 = vector.load %arg5[%c0_6, %c0_7] : memref<32x384xbf16, #tpu.memory_space<vmem>>, vector<32x384xbf16>
    %c0_8 = arith.constant 0 : index
    %c0_9 = arith.constant 0 : index
    %7 = vector.load %arg6[%c0_8, %c0_9] : memref<1x384xf32, #tpu.memory_space<vmem>>, vector<1x384xf32>
    %c0_10 = arith.constant 0 : index
    %c0_11 = arith.constant 0 : index
    %8 = vector.load %arg7[%c0_10, %c0_11] : memref<1x384xf32, #tpu.memory_space<vmem>>, vector<1x384xf32>
    %cst = arith.constant dense<0.000000e+00> : vector<8x384xf32>
    %9 = tpu.matmul %3, %6, %cst {dimension_numbers = #tpu.dot_dimension_numbers<[1], [0], [0], [1], [0, 0, 1, 1], [], []>} : vector<8x32xbf16>, vector<32x384xbf16>, vector<8x384xf32> -> vector<8x384xf32>
    %10 = vector.broadcast %4 : vector<8x1xf32> to vector<8x384xf32>
    %11 = vector.broadcast %7 : vector<1x384xf32> to vector<8x384xf32>
    %12 = arith.addf %10, %11 : vector<8x384xf32>
    %cst_12 = arith.constant 2.000000e+00 : f32
    %13 = vector.broadcast %cst_12 : f32 to vector<8x384xf32>
    %14 = arith.mulf %13, %9 : vector<8x384xf32>
    %15 = arith.subf %12, %14 : vector<8x384xf32>
    %cst_13 = arith.constant 0.000000e+00 : f32
    %16 = vector.broadcast %cst_13 : f32 to vector<8x384xf32>
    %17 = arith.maximumf %15, %16 : vector<8x384xf32>
    %18 = vector.broadcast %5 : vector<8x1xf32> to vector<8x384xf32>
    %19 = vector.broadcast %8 : vector<1x384xf32> to vector<8x384xf32>
    %20 = arith.cmpf one, %18, %19 : vector<8x384xf32>
    %21 = arith.extui %20 : vector<8x384xi1> to vector<8x384xi32>
    %22 = arith.sitofp %21 : vector<8x384xi32> to vector<8x384xf32>
    %cst_14 = arith.constant 1.000000e+00 : f32
    %23 = vector.broadcast %cst_14 : f32 to vector<8x384xf32>
    %24 = arith.subf %23, %22 : vector<8x384xf32>
    %cst_15 = arith.constant 5.000000e-01 : f32
    %25 = vector.broadcast %cst_15 : f32 to vector<8x384xf32>
    %26 = arith.mulf %24, %25 : vector<8x384xf32>
    %27 = arith.mulf %26, %17 : vector<8x384xf32>
    %cst_16 = arith.constant 5.000000e-01 : f32
    %28 = vector.broadcast %cst_16 : f32 to vector<8x384xf32>
    %29 = arith.mulf %22, %28 : vector<8x384xf32>
    %cst_17 = arith.constant 6.400000e+01 : f32
    %30 = vector.broadcast %cst_17 : f32 to vector<8x384xf32>
    %31 = arith.subf %30, %17 : vector<8x384xf32>
    %cst_18 = arith.constant 0.000000e+00 : f32
    %32 = vector.broadcast %cst_18 : f32 to vector<8x384xf32>
    %33 = arith.maximumf %31, %32 : vector<8x384xf32>
    %34 = arith.mulf %29, %33 : vector<8x384xf32>
    %35 = arith.addf %27, %34 : vector<8x384xf32>
    %c0_19 = arith.constant 0 : index
    %c0_20 = arith.constant 0 : index
    %36 = vector.load %arg9[%c0_19, %c0_20] : memref<8x384xf32, #tpu.memory_space<vmem>>, vector<8x384xf32>
    %37 = arith.addf %36, %35 : vector<8x384xf32>
    %c0_21 = arith.constant 0 : index
    %c0_22 = arith.constant 0 : index
    %38 = vector.load %arg9[%c0_21, %c0_22] : memref<8x384xf32, #tpu.memory_space<vmem>>, vector<8x384xf32>
    tpu.vector_store %arg9[%c0_21, %c0_22], %37 {strides = array<i32>} : memref<8x384xf32, #tpu.memory_space<vmem>>, vector<8x384xf32>,
    %c0_i32_23 = arith.constant 0 : i32
    %39 = arith.cmpi eq, %arg1, %c0_i32_23 : i32
    %40 = arith.extui %39 : i1 to i32
    %c0_i32_24 = arith.constant 0 : i32
    %41 = arith.cmpi ne, %40, %c0_i32_24 : i32
    scf.if %41 {
      %c0_25 = arith.constant 0 : index
      %c0_26 = arith.constant 0 : index
      %42 = vector.load %arg9[%c0_25, %c0_26] : memref<8x384xf32, #tpu.memory_space<vmem>>, vector<8x384xf32>
      %43 = vector.shape_cast %42 : vector<8x384xf32> to vector<1x8x384xf32>
      %cst_27 = arith.constant dense<0.000000e+00> : vector<1xf32>
      %44 = vector.multi_reduction <add>, %43, %cst_27 [1, 2] : vector<1x8x384xf32> to vector<1xf32>
      %45 = vector.shape_cast %44 : vector<1xf32> to vector<1x1x1xf32>
      %46 = vector.extract %45[0, 0, 0] : f32 from vector<1x1x1xf32>
      %47 = vector.broadcast %46 : f32 to vector<1x1x1xf32>
      %c0_28 = arith.constant 0 : index
      %c0_29 = arith.constant 0 : index
      %c0_30 = arith.constant 0 : index
      %48 = vector.load %arg8[%c0_28, %c0_29, %c0_30] : memref<1x1x1xf32, #tpu.memory_space<vmem>>, vector<1x1x1xf32>
      tpu.vector_store %arg8[%c0_28, %c0_29, %c0_30], %47 {strides = array<i32>} : memref<1x1x1xf32, #tpu.memory_space<vmem>>, vector<1x1x1xf32>,
    } else {
    }
    return
  }
  func.func @transform_0(%arg0: i32, %arg1: i32) -> (i32, i32) {
    %c0_i32 = arith.constant 0 : i32
    %c0_i32_0 = arith.constant 0 : i32
    %c0_i32_1 = arith.constant 0 : i32
    return %c0_i32, %c0_i32_0 : i32, i32
  }
  func.func @transform_1(%arg0: i32, %arg1: i32) -> (i32, i32) {
    %c0_i32 = arith.constant 0 : i32
    %c0_i32_0 = arith.constant 0 : i32
    %c0_i32_1 = arith.constant 0 : i32
    return %c0_i32, %c0_i32_0 : i32, i32
  }
  func.func @transform_2(%arg0: i32, %arg1: i32) -> (i32, i32) {
    %c0_i32 = arith.constant 0 : i32
    %c0_i32_0 = arith.constant 0 : i32
    %c0_i32_1 = arith.constant 0 : i32
    return %c0_i32, %c0_i32_0 : i32, i32
  }
  func.func @transform_3(%arg0: i32, %arg1: i32) -> (i32, i32) {
    %c1_i32 = arith.constant 1 : i32
    %0 = arith.muli %arg0, %c1_i32 : i32
    %1 = arith.addi %0, %arg1 : i32
    %c0_i32 = arith.constant 0 : i32
    %c0_i32_0 = arith.constant 0 : i32
    return %c0_i32, %1 : i32, i32
  }
  func.func @transform_4(%arg0: i32, %arg1: i32) -> (i32, i32) {
    %c1_i32 = arith.constant 1 : i32
    %0 = arith.muli %arg0, %c1_i32 : i32
    %1 = arith.addi %0, %arg1 : i32
    %c0_i32 = arith.constant 0 : i32
    %c0_i32_0 = arith.constant 0 : i32
    return %c0_i32, %1 : i32, i32
  }
  func.func @transform_5(%arg0: i32, %arg1: i32) -> (i32, i32) {
    %c1_i32 = arith.constant 1 : i32
    %0 = arith.muli %arg0, %c1_i32 : i32
    %1 = arith.addi %0, %arg1 : i32
    %c0_i32 = arith.constant 0 : i32
    %c0_i32_0 = arith.constant 0 : i32
    return %c0_i32, %1 : i32, i32
  }
  func.func @transform_6(%arg0: i32, %arg1: i32) -> (i32, i32, i32) {
    %c0_i32 = arith.constant 0 : i32
    %c0_i32_0 = arith.constant 0 : i32
    %c0_i32_1 = arith.constant 0 : i32
    return %arg0, %c0_i32, %c0_i32_0 : i32, i32, i32
  }
}

</mosaic_0001>

<llo_original>
// kernel: step.1
$region0: #{step.1}
  #allocation0 [shape = 'u32[]', space=smem, size = 0x4, offset = 0x4, fixed_abs, tag = 'smem constant byte address 0x4 - core index']
  #allocation1 [shape = 'u32[144,128]{1,0:T(1,128)}', space=vmem, size = 0x12000, scoped, tag = 'internal scratch']
  #allocation2 [shape = 'f32[8,384]{1,0:T(8,128)}', space=vmem, size = 0x3000, scoped, tag = 'scratch operand']
  %s0 = inlined_call_operand.vmem [shape: bf16[8,32], index: 0, kind: input, shape index: {}]
  %s1 = inlined_call_operand.vmem [shape: f32[8,1], index: 1, kind: input, shape index: {}]
  %s2 = inlined_call_operand.vmem [shape: f32[8,1], index: 2, kind: input, shape index: {}]
  %s3 = inlined_call_operand.vmem [shape: bf16[32,384], index: 3, kind: input, shape index: {}]
  %s4 = inlined_call_operand.vmem [shape: f32[1,384], index: 4, kind: input, shape index: {}]
  %s5 = inlined_call_operand.vmem [shape: f32[1,384], index: 5, kind: input, shape index: {}]
  %s6 = inlined_call_operand.hbm [shape: f32[1,1,1], index: 6, kind: output, shape index: {}]
  %s7 = sld [smem:[#allocation0]]
  $region42: #{step.1} parent=0
    _
  %s9 = ssub.s32 1, %s7
  %s10 = scalar_select 0, %s9, %s7
  $region1: #{step.1} parent=0
    #allocation3 [shape = 'u8[512]{0}', space=vmem, size = 0x400, scoped, tag = 'output window, operand 0, single buffered']
    #allocation4 [shape = 's32[1]{0}', space=sflag, size = 0x4, scoped, tag = 'scoped memory for step.1']
    %11 = vsyncpa [#allocation4], 0
    // Predicated region
    $region2: #{step.1} parent=1 // pred_check
      _
    $region3: #{step.1} parent=1 // pred_check_branch
      %13 = sbr.rel (0) target = $region5
    $region4: #{step.1} parent=1 // pred_region
      _
    $region5: #{step.1} parent=1 // pred_fallthru
      _
    // Predicated region
    $region6: #{step.1} parent=1 // pred_check
      _
    $region7: #{step.1} parent=1 // pred_check_branch
      %15 = sbr.rel (0) target = $region9
    $region8: #{step.1} parent=1 // pred_region
      _
    $region9: #{step.1} parent=1 // pred_fallthru
      _
    // Predicated region
    $region10: #{step.1} parent=1 // pred_check
      _
    $region11: #{step.1} parent=1 // pred_check_branch
      %17 = sbr.rel (0) target = $region13
    $region12: #{step.1} parent=1 // pred_region
      _
    $region13: #{step.1} parent=1 // pred_fallthru
      _
    // Predicated region
    $region14: #{step.1} parent=1 // pred_check
      _
    $region15: #{step.1} parent=1 // pred_check_branch
      %19 = sbr.rel (0) target = $region17
    $region16: #{step.1} parent=1 // pred_region
      %s20 = sadd.s32 0, 0
      %s21 = smul.u32 3, %s20
      %p22 = scmp.lt.s32.totalorder %s21, 2
      %s23 = scalar_select %p22, %s21, 2
      %s24 = smul.addr %s23, 4
      %s25 = scalar_lea.vmem %s3, %s24
      %s26 = sadd.s32 0, 0
      %s27 = smul.u32 3, %s26
    $region17: #{step.1} parent=1 // pred_fallthru
      _
    // Predicated region
    $region18: #{step.1} parent=1 // pred_check
      _
    $region19: #{step.1} parent=1 // pred_check_branch
      %29 = sbr.rel (0) target = $region21
    $region20: #{step.1} parent=1 // pred_region
      %s30 = sadd.s32 0, 0
      %s31 = smul.u32 3, %s30
      %p32 = scmp.lt.s32.totalorder %s31, 2
      %s33 = scalar_select %p32, %s31, 2
      %s34 = scalar_lea.vmem %s4, %s33
      %s35 = sadd.s32 0, 0
      %s36 = smul.u32 3, %s35
    $region21: #{step.1} parent=1 // pred_fallthru
      _
    // Predicated region
    $region22: #{step.1} parent=1 // pred_check
      _
    $region23: #{step.1} parent=1 // pred_check_branch
      %38 = sbr.rel (0) target = $region25
    $region24: #{step.1} parent=1 // pred_region
      %s39 = sadd.s32 0, 0
      %s40 = smul.u32 3, %s39
      %p41 = scmp.lt.s32.totalorder %s40, 2
      %s42 = scalar_select %p41, %s40, 2
      %s43 = scalar_lea.vmem %s5, %s42
      %s44 = sadd.s32 0, 0
      %s45 = smul.u32 3, %s44
    $region25: #{step.1} parent=1 // pred_fallthru
      _
    %s46 = sadd.s32 0, 0
    %s47 = smul.u32 3, %s46
    %p48 = scmp.lt.s32.totalorder %s47, 2
    %s49 = scalar_select %p48, %s47, 2
    %s50 = smul.addr %s49, 4
    %s51 = scalar_lea.vmem %s3, %s50
    %s52 = sadd.s32 0, 0
    %s53 = smul.u32 3, %s52
    %p54 = scmp.lt.s32.totalorder %s53, 2
    %s55 = scalar_select %p54, %s53, 2
    %s56 = scalar_lea.vmem %s4, %s55
    %s57 = sadd.s32 0, 0
    %s58 = smul.u32 3, %s57
    %p59 = scmp.lt.s32.totalorder %s58, 2
    %s60 = scalar_select %p59, %s58, 2
    %s61 = scalar_lea.vmem %s5, %s60
    %s62 = sadd.s32 0, 0
    %s63 = smul.u32 3, %s62
    %p64 = scmp.lt.s32.totalorder %s63, 2
    %s65 = scalar_select %p64, %s63, 2
    %s66 = smul.addr %s65, 4
    %s67 = scalar_lea.vmem %s3, %s66
    %s68 = sadd.s32 0, 0
    %s69 = smul.u32 3, %s68
    %s70 = sadd.s32 0, 0
    %s71 = smul.u32 3, %s70
    %p72 = scmp.lt.s32.totalorder %s71, 2
    %s73 = scalar_select %p72, %s71, 2
    %s74 = scalar_lea.vmem %s4, %s73
    %s75 = sadd.s32 0, 0
    %s76 = smul.u32 3, %s75
    %s77 = sadd.s32 0, 0
    %s78 = smul.u32 3, %s77
    %p79 = scmp.lt.s32.totalorder %s78, 2
    %s80 = scalar_select %p79, %s78, 2
    %s81 = scalar_lea.vmem %s5, %s80
    %s82 = sadd.s32 0, 0
    %s83 = smul.u32 3, %s82
    %p85 = scmp.eq.s32.totalorder 0, 0
    // Predicated region
    $region26: #{step.1} parent=1 // pred_check
      %p86 = pneg %p85
    $region27: #{step.1} parent=1 // pred_check_branch
      %88 = sbr.rel (%p86) target = $region29
    $region28: #{step.1} parent=1 // pred_region
      %89 = vst [vmem:[#allocation2] sm:$0xff] 0.0
      %90 = vst [vmem:[#allocation2 + $0x8] sm:$0xff] 0.0
      %91 = vst [vmem:[#allocation2 + $0x10] sm:$0xff] 0.0
    $region29: #{step.1} parent=1 // pred_fallthru
      _
    %v92 = vld [vmem:[%s0] sm:$0xf]
    %v93 = vld [vmem:[%s1] sm:$0xff]
    %v94 = vld [vmem:[%s2] sm:$0xff]
    %v95 = vld [vmem:[%s67] sm:$0xff]
    %v96 = vld [vmem:[%s67 + $0x8] sm:$0xf]
    %v97 = vld [vmem:[%s67 + $0xc] sm:$0xff]
    %v98 = vld [vmem:[%s67 + $0x14] sm:$0xf]
    %v99 = vld [vmem:[%s67 + $0x18] sm:$0xff]
    %v100 = vld [vmem:[%s67 + $0x20] sm:$0xf]
    %v101 = vld [vmem:[%s67 + $0x24] sm:$0xff]
    %v102 = vld [vmem:[%s67 + $0x2c] sm:$0xf]
    %v103 = vld [vmem:[%s74] sm:$0x7]
    %v104 = vld [vmem:[%s81] sm:$0x7]
    %v113 = vunpack.c.l.b16 %v95
    %v114 = vunpack.c.h.b16 %v95
    %v115 = vunpack.c.l.b16 %v96
    %v116 = vunpack.c.l.b16 %v97
    %v117 = vunpack.c.h.b16 %v97
    %v118 = vunpack.c.l.b16 %v98
    %v119 = vunpack.c.l.b16 %v99
    %v120 = vunpack.c.h.b16 %v99
    %v121 = vunpack.c.l.b16 %v100
    %v122 = vunpack.c.l.b16 %v101
    %v123 = vunpack.c.h.b16 %v101
    %v124 = vunpack.c.l.b16 %v102
    %v125 = vpack.c.b16 %v116, %v113
    %v126 = vpack.c.b16 %v117, %v114
    %v127 = vpack.c.b16 %v118, %v115
    %v128 = vpack.c.b16 %v122, %v119
    %v129 = vpack.c.b16 %v123, %v120
    %v130 = vpack.c.b16 %v124, %v121
    %vm137 = vcmask 261120
    %v139 = vsel %vm137, %v92, 0
    %141 = vmatprep.subr.bf16.mxu0 %v126
    %142 = vmatpush1.bf16.msra.mxu0 %v125
    %143 = vmatprep.subr.bf16.mxu0 %v129
    %144 = vmatpush1.bf16.msra.mxu0 %v128
    %145 = vmatprep.subr.bf16.mxu0 0
    %146 = vmatpush1.bf16.msra.mxu0 0
    %147 = vmatprep.subr.bf16.mxu0 0
    %148 = vmatpush1.bf16.msra.mxu0 0
    %149 = vmatprep.subr.bf16.mxu0 0
    %150 = vmatpush1.bf16.msra.mxu0 0
    %151 = vmatprep.subr.bf16.mxu0 0
    %152 = vmatpush1.bf16.msra.mxu0 0
    %153 = vmatprep.subr.bf16.mxu0 0
    %154 = vmatpush1.bf16.msra.mxu0 0
    %155 = vmatprep.subr.bf16.mxu0 0
    %156 = vmatpush1.bf16.msra.mxu0 0
    %157 = vmatprep.subr.bf16.mxu0 0
    %158 = vmatpush1.bf16.msra.mxu0 0
    %159 = vmatprep.subr.bf16.mxu0 0
    %160 = vmatpush1.bf16.msra.mxu0 0
    %161 = vmatprep.subr.bf16.mxu0 0
    %162 = vmatpush1.bf16.msra.mxu0 0
    %163 = vmatprep.subr.bf16.mxu0 0
    %164 = vmatpush1.bf16.msra.mxu0 0
    %165 = vmatprep.subr.bf16.mxu0 0
    %166 = vmatpush1.bf16.msra.mxu0 0
    %167 = vmatprep.subr.bf16.mxu0 0
    %168 = vmatpush1.bf16.msra.mxu0 0
    %169 = vmatprep.subr.bf16.mxu0 0
    %170 = vmatpush1.bf16.msra.mxu0 0
    %171 = vmatprep.subr.bf16.mxu0 0
    %172 = vmatpush1.bf16.msra.mxu0 0
    %173 = vmatprep.mubr.bf16.mxu0 0
    %174 = vmatmul.mubr.bf16.gmra.mrb[0].mxu0 %v139
    %v175 = vpop.f32.mrb[0].mxu0
    %v176 = vadd.f32 0.0, %v175
    %v177 = vpop.f32.mrb[0].mxu0
    %v178 = vadd.f32 0.0, %v177
    %v179 = vpop.f32.mrb[0].mxu0
    %v180 = vpop.f32.mrb[0].mxu0
    %181 = vdwg.mxu0
    %182 = vmatprep.subr.bf16.mxu0 0
    %183 = vmatpush1.bf16.msra.mxu0 %v127
    %184 = vmatprep.subr.bf16.mxu0 0
    %185 = vmatpush1.bf16.msra.mxu0 %v130
    %186 = vmatprep.subr.bf16.mxu0 0
    %187 = vmatpush1.bf16.msra.mxu0 0
    %188 = vmatprep.subr.bf16.mxu0 0
    %189 = vmatpush1.bf16.msra.mxu0 0
    %190 = vmatprep.subr.bf16.mxu0 0
    %191 = vmatpush1.bf16.msra.mxu0 0
    %192 = vmatprep.subr.bf16.mxu0 0
    %193 = vmatpush1.bf16.msra.mxu0 0
    %194 = vmatprep.subr.bf16.mxu0 0
    %195 = vmatpush1.bf16.msra.mxu0 0
    %196 = vmatprep.subr.bf16.mxu0 0
    %197 = vmatpush1.bf16.msra.mxu0 0
    %198 = vmatprep.subr.bf16.mxu0 0
    %199 = vmatpush1.bf16.msra.mxu0 0
    %200 = vmatprep.subr.bf16.mxu0 0
    %201 = vmatpush1.bf16.msra.mxu0 0
    %202 = vmatprep.subr.bf16.mxu0 0
    %203 = vmatpush1.bf16.msra.mxu0 0
    %204 = vmatprep.subr.bf16.mxu0 0
    %205 = vmatpush1.bf16.msra.mxu0 0
    %206 = vmatprep.subr.bf16.mxu0 0
    %207 = vmatpush1.bf16.msra.mxu0 0
    %208 = vmatprep.subr.bf16.mxu0 0
    %209 = vmatpush1.bf16.msra.mxu0 0
    %210 = vmatprep.subr.bf16.mxu0 0
    %211 = vmatpush1.bf16.msra.mxu0 0
    %212 = vmatprep.subr.bf16.mxu0 0
    %213 = vmatpush1.bf16.msra.mxu0 0
    %214 = vmatprep.mubr.bf16.mxu0 0
    %215 = vmatmul.mubr.bf16.gmra.mrb[0].mxu0 %v139
    %v216 = vpop.f32.mrb[0].mxu0
    %v217 = vadd.f32 0.0, %v216
    %v218 = vpop.f32.mrb[0].mxu0
    %v219 = vpop.f32.mrb[0].mxu0
    %v220 = vpop.f32.mrb[0].mxu0
    %221 = vdwg.mxu0
    %223 = vset.pattern.permute.xlu0 0
    %224 = vperm.xlu0 %223, %v93
    %v225 = vpop.permute.xlu0 %224
    %v228 = vlaneseq
    %v229 = vshrl.u32 %v228, 7
    %v230 = vsub.s32 0, %v229
    %v231 = vrot.slane %v103, %v230
    %v232 = vlaneseq
    %v233 = vshrl.u32 %v232, 7
    %v234 = vsub.s32 1, %v233
    %v235 = vrot.slane %v103, %v234
    %v236 = vlaneseq
    %v237 = vshrl.u32 %v236, 7
    %v238 = vsub.s32 2, %v237
    %v239 = vrot.slane %v103, %v238
    %v243 = vadd.f32 %v225, %v231
    %v244 = vadd.f32 %v225, %v235
    %v245 = vadd.f32 %v225, %v239
    %v246 = vmul.f32 %v176, 2.0
    %v247 = vmul.f32 %v178, 2.0
    %v248 = vmul.f32 %v217, 2.0
    %v249 = vsub.f32 %v243, %v246
    %v250 = vsub.f32 %v244, %v247
    %v251 = vsub.f32 %v245, %v248
    %v252 = vmax.f32 %v249, 0.0
    %v253 = vmax.f32 %v250, 0.0
    %v254 = vmax.f32 %v251, 0.0
    %256 = vset.pattern.permute.xlu0 0
    %257 = vperm.xlu0 %256, %v94
    %v258 = vpop.permute.xlu0 %257
    %v261 = vlaneseq
    %v262 = vshrl.u32 %v261, 7
    %v263 = vsub.s32 0, %v262
    %v264 = vrot.slane %v104, %v263
    %v265 = vlaneseq
    %v266 = vshrl.u32 %v265, 7
    %v267 = vsub.s32 1, %v266
    %v268 = vrot.slane %v104, %v267
    %v269 = vlaneseq
    %v270 = vshrl.u32 %v269, 7
    %v271 = vsub.s32 2, %v270
    %v272 = vrot.slane %v104, %v271
    %vm276 = vcmp.ne.f32.partialorder %v258, %v264
    %vm277 = vcmp.ne.f32.partialorder %v258, %v268
    %vm278 = vcmp.ne.f32.partialorder %v258, %v272
    %v279 = vsel %vm276, 1, 0
    %v280 = vsel %vm277, 1, 0
    %v281 = vsel %vm278, 1, 0
    %v282 = vcvt.s32.f32 %v279
    %v283 = vcvt.s32.f32 %v280
    %v284 = vcvt.s32.f32 %v281
    %v285 = vsub.f32 1.0, %v282
    %v286 = vsub.f32 1.0, %v283
    %v287 = vsub.f32 1.0, %v284
    %v288 = vmul.f32 %v285, 0.5
    %v289 = vmul.f32 %v286, 0.5
    %v290 = vmul.f32 %v287, 0.5
    %v291 = vmul.f32 %v288, %v252
    %v292 = vmul.f32 %v289, %v253
    %v293 = vmul.f32 %v290, %v254
    %v294 = vmul.f32 %v282, 0.5
    %v295 = vmul.f32 %v283, 0.5
    %v296 = vmul.f32 %v284, 0.5
    %v297 = vsub.f32 64.0, %v252
    %v298 = vsub.f32 64.0, %v253
    %v299 = vsub.f32 64.0, %v254
    %v300 = vmax.f32 %v297, 0.0
    %v301 = vmax.f32 %v298, 0.0
    %v302 = vmax.f32 %v299, 0.0
    %v303 = vmul.f32 %v294, %v300
    %v304 = vmul.f32 %v295, %v301
    %v305 = vmul.f32 %v296, %v302
    %v306 = vadd.f32 %v291, %v303
    %v307 = vadd.f32 %v292, %v304
    %v308 = vadd.f32 %v293, %v305
    %v309 = vld [vmem:[#allocation2] sm:$0xff]
    %v310 = vld [vmem:[#allocation2 + $0x8] sm:$0xff]
    %v311 = vld [vmem:[#allocation2 + $0x10] sm:$0xff]
    %v312 = vadd.f32 %v309, %v306
    %v313 = vadd.f32 %v310, %v307
    %v314 = vadd.f32 %v311, %v308
    %315 = vst [vmem:[#allocation2] sm:$0xff] %v312
    %316 = vst [vmem:[#allocation2 + $0x8] sm:$0xff] %v313
    %317 = vst [vmem:[#allocation2 + $0x10] sm:$0xff] %v314
    // Predicated region
    $region30: #{step.1} parent=1 // pred_check
      %p318 = pneg %p85
    $region31: #{step.1} parent=1 // pred_check_branch
      %320 = sbr.rel (%p318) target = $region33
    $region32: #{step.1} parent=1 // pred_region
      %v321 = vld [vmem:[#allocation2] sm:$0xff]
      %v322 = vld [vmem:[#allocation2 + $0x8] sm:$0xff]
      %v323 = vld [vmem:[#allocation2 + $0x10] sm:$0xff]
      %v324 = vadd.f32 %v321, %v322
      %v325 = vadd.f32 %v324, %v323
      %326 = vadd.xlane.f32.xlu0 %v325
      %v327 = vpop.xlane.xlu0 %326
      %v328 = vrot.slane %v327, 4
      %v329 = vadd.f32 %v327, %v328
      %v330 = vrot.slane %v329, 2
      %v331 = vadd.f32 %v329, %v330
      %v332 = vrot.slane %v331, 1
      %v333 = vadd.f32 %v331, %v332
      %s334 = vtos %v333
      %v335 = vstv %s334
      %vm336 = vcmask 0
      %337 = vst.msk [vmem:[#allocation3] sm:$0x1] %vm336, %v335
    $region33: #{step.1} parent=1 // pred_fallthru
      _
    // Predicated region
    $region34: #{step.1} parent=1 // pred_check
      _
    $region35: #{step.1} parent=1 // pred_check_branch
      %339 = sbr.rel (0) target = $region37
    $region36: #{step.1} parent=1 // pred_region
      %s341 = ssub.s32 16, 16
      %342 = vsyncadd [#allocation4], %s341
      %s344 = sshll.u32 [#allocation3], 4
      %s345 = int_to_ptr.vmem [resolvable:$true] %s344
      %347 = dma.vmem_to_hbm [thread:$0]  %s345, 16, %s6, [#allocation4]
    $region37: #{step.1} parent=1 // pred_fallthru
      _
    // Predicated region
    $region38: #{step.1} parent=1 // pred_check
      _
    $region39: #{step.1} parent=1 // pred_check_branch
      %349 = sbr.rel (0) target = $region41
    $region40: #{step.1} parent=1 // pred_region
      %350 = dma.done [#allocation4], 16
    $region41: #{step.1} parent=1 // pred_fallthru
      _
    %351 = vsyncpa [#allocation4], 1

</llo_original>
